<compile_context>
chip_gen: v5e
topology: v5e:2x2
jax: 0.10.0
libtpu: 0.0.40
codegen_flags: <defaults>
</compile_context>

<pallas_src>
import math

import jax
import jax.numpy as jnp
from jax.experimental import pallas as pl
from jax.experimental.pallas import tpu as pltpu

PAD = 128          # lane-dense padded width for every layer
NUM_LAYERS = 6     # conv1(k=6), conv2, conv3, conv4, fc1, fc2


def cnn_kernel(x_ref, w_ref, b_ref, o_ref):
    # x_ref: (M, PAD) f32   w_ref: (6, PAD, PAD) bf16   b_ref: (6, 1, PAD) f32
    h = x_ref[...]
    for l in range(NUM_LAYERS):
        # MXU in bf16, accumulate in f32; bias add / ReLU stay f32 on the VPU.
        z = jnp.dot(h.astype(jnp.bfloat16), w_ref[l],
                    preferred_element_type=jnp.float32) + b_ref[l]
        h = jnp.maximum(z, 0.0) if l < NUM_LAYERS - 1 else z  # no ReLU after fc2
    o_ref[...] = h


def init_params(key, num_channels, num_classes, kernel1=6):
    """PyTorch-style uniform(-1/sqrt(fan_in), 1/sqrt(fan_in)) init, deterministic."""
    nc = num_channels
    dims = [
        ("conv1", nc * 2, nc, kernel1),
        ("conv2", nc * 3, nc * 2, 1),
        ("conv3", nc * 4, nc * 3, 1),
        ("conv4", nc * 5, nc * 4, 1),
    ]
    params = {}
    keys = jax.random.split(key, 12)
    ki = 0
    for name, oc, ic, k in dims:
        bound = 1.0 / math.sqrt(ic * k)
        params[name + "_w"] = jax.random.uniform(
            keys[ki], (oc, ic, k), jnp.float32, -bound, bound); ki += 1
        params[name + "_b"] = jax.random.uniform(
            keys[ki], (oc,), jnp.float32, -bound, bound); ki += 1
    for name, out_f, in_f in [("fc1", nc * 4, nc * 5), ("fc2", num_classes, nc * 4)]:
        bound = 1.0 / math.sqrt(in_f)
        params[name + "_w"] = jax.random.uniform(
            keys[ki], (out_f, in_f), jnp.float32, -bound, bound); ki += 1
        params[name + "_b"] = jax.random.uniform(
            keys[ki], (out_f,), jnp.float32, -bound, bound); ki += 1
    return params


def prep_params(params):
    """One-time host-side prep: transpose + zero-pad + pack weights/biases.

    Returns:
      w_slab: (6, PAD, PAD) bf16 — layer l weight in matmul (K, N) form.
      b_slab: (6, 1, PAD)   f32  — layer l bias.
    """
    mats, biases = [], []
    # conv1: (2C, C, 6) -> (C*6, 2C); kernel=6 over L=6 => single window matmul
    mats.append(params["conv1_w"].reshape(params["conv1_w"].shape[0], -1).T)
    biases.append(params["conv1_b"])
    # kernel=1 convs at L=1: (OC, IC, 1) -> (IC, OC)
    for name in ("conv2", "conv3", "conv4"):
        mats.append(params[name + "_w"][:, :, 0].T)
        biases.append(params[name + "_b"])
    # linears: (out, in) -> (in, out)
    for name in ("fc1", "fc2"):
        mats.append(params[name + "_w"].T)
        biases.append(params[name + "_b"])

    w_slab = jnp.zeros((NUM_LAYERS, PAD, PAD), jnp.float32)
    b_slab = jnp.zeros((NUM_LAYERS, 1, PAD), jnp.float32)
    for l, (w, b) in enumerate(zip(mats, biases)):
        k, n = w.shape
        w_slab = w_slab.at[l, :k, :n].set(w)
        b_slab = b_slab.at[l, 0, :n].set(b)
    return w_slab.astype(jnp.bfloat16), b_slab


def cnn_forward(x, w_slab, b_slab, num_classes):
    # x: (1, C, 6). dropout_rate=0.0 -> identity; MaxPool1d never applied.
    n, c, L = x.shape
    assert n == 1 and L == 6, "module's flatten/fc1 only consistent with N=1, L=6"
    x2 = jnp.zeros((1, PAD), jnp.float32).at[:, :c * L].set(x.reshape(1, c * L))

    vmem = pl.BlockSpec(memory_space=pltpu.MemorySpace.VMEM)
    out = pl.pallas_call(
        cnn_kernel,
        out_shape=jax.ShapeDtypeStruct((1, PAD), jnp.float32),
        in_specs=[vmem, vmem, vmem],
        out_specs=vmem,
    )(x2, w_slab, b_slab)
    return out[:, :num_classes]


def cnn_reference(x, params):
    """Pure-JAX f32 reference of the PyTorch forward (for validation)."""
    h = x.reshape(1, -1)
    w1 = params["conv1_w"].reshape(params["conv1_w"].shape[0], -1).T
    h = jnp.maximum(h @ w1 + params["conv1_b"], 0.0)
    for name in ("conv2", "conv3", "conv4"):
        h = jnp.maximum(h @ params[name + "_w"][:, :, 0].T + params[name + "_b"], 0.0)
    h = jnp.maximum(h @ params["fc1_w"].T + params["fc1_b"], 0.0)
    return h @ params["fc2_w"].T + params["fc2_b"]


if __name__ == "__main__":
    num_channels = 8
    num_classes = 4
    seq_len = 6          # required so that L_out == 1 and fc1 input == 5*num_channels
    batch = 1            # required by out.view(-1, out.numel())

    key = jax.random.PRNGKey(0)
    pkey, xkey = jax.random.split(key)
    params = init_params(pkey, num_channels, num_classes)
    w_slab, b_slab = prep_params(params)          # one-time packing, off hot path
    x = jax.random.normal(xkey, (batch, num_channels, seq_len), jnp.float32)

    fwd = jax.jit(cnn_forward, static_argnames=("num_classes",))
    y = fwd(x, w_slab, b_slab, num_classes)
    jax.block_until_ready(y)
    assert y.shape == (1, num_classes)

    # bf16-MXU vs f32 reference: expect ~1e-2 relative error through 6 layers.
    y_ref = cnn_reference(x, params)
    assert jnp.allclose(y, y_ref, rtol=1e-1, atol=1e-1), (y, y_ref)

    print("KERNEL_OK")
</pallas_src>

<mosaic_0001>
module attributes {stable_mosaic.version = 11 : i64} {
  func.func @cnn_kernel(%arg0: memref<1x128xf32, #tpu.memory_space<vmem>>, %arg1: memref<6x128x128xbf16, #tpu.memory_space<vmem>>, %arg2: memref<6x1x128xf32, #tpu.memory_space<vmem>>, %arg3: memref<1x128xf32, #tpu.memory_space<vmem>>) attributes {dimension_semantics = [], scalar_prefetch = 0 : i64, scratch_operands = 0 : i64, tpu.core_type = #tpu.core_type<tc>} {
    %c0 = arith.constant 0 : index
    %c0_0 = arith.constant 0 : index
    %0 = vector.load %arg0[%c0, %c0_0] : memref<1x128xf32, #tpu.memory_space<vmem>>, vector<1x128xf32>
    %1 = arith.truncf %0 : vector<1x128xf32> to vector<1x128xbf16>
    %c0_1 = arith.constant 0 : index
    %c0_2 = arith.constant 0 : index
    %c0_3 = arith.constant 0 : index
    %2 = vector.load %arg1[%c0_1, %c0_2, %c0_3] : memref<6x128x128xbf16, #tpu.memory_space<vmem>>, vector<1x128x128xbf16>
    %3 = vector.shape_cast %2 : vector<1x128x128xbf16> to vector<128x128xbf16>
    %cst = arith.constant dense<0.000000e+00> : vector<1x128xf32>
    %4 = tpu.matmul %1, %3, %cst {dimension_numbers = #tpu.dot_dimension_numbers<[1], [0], [0], [1], [0, 0, 1, 1], [], []>} : vector<1x128xbf16>, vector<128x128xbf16>, vector<1x128xf32> -> vector<1x128xf32>
    %c0_4 = arith.constant 0 : index
    %c0_5 = arith.constant 0 : index
    %c0_6 = arith.constant 0 : index
    %5 = vector.load %arg2[%c0_4, %c0_5, %c0_6] : memref<6x1x128xf32, #tpu.memory_space<vmem>>, vector<1x1x128xf32>
    %6 = vector.shape_cast %5 : vector<1x1x128xf32> to vector<1x128xf32>
    %7 = arith.addf %4, %6 : vector<1x128xf32>
    %cst_7 = arith.constant 0.000000e+00 : f32
    %8 = vector.broadcast %cst_7 : f32 to vector<1x128xf32>
    %9 = arith.maximumf %7, %8 : vector<1x128xf32>
    %10 = arith.truncf %9 : vector<1x128xf32> to vector<1x128xbf16>
    %c1 = arith.constant 1 : index
    %c0_8 = arith.constant 0 : index
    %c0_9 = arith.constant 0 : index
    %11 = vector.load %arg1[%c1, %c0_8, %c0_9] : memref<6x128x128xbf16, #tpu.memory_space<vmem>>, vector<1x128x128xbf16>
    %12 = vector.shape_cast %11 : vector<1x128x128xbf16> to vector<128x128xbf16>
    %cst_10 = arith.constant dense<0.000000e+00> : vector<1x128xf32>
    %13 = tpu.matmul %10, %12, %cst_10 {dimension_numbers = #tpu.dot_dimension_numbers<[1], [0], [0], [1], [0, 0, 1, 1], [], []>} : vector<1x128xbf16>, vector<128x128xbf16>, vector<1x128xf32> -> vector<1x128xf32>
    %c1_11 = arith.constant 1 : index
    %c0_12 = arith.constant 0 : index
    %c0_13 = arith.constant 0 : index
    %14 = vector.load %arg2[%c1_11, %c0_12, %c0_13] : memref<6x1x128xf32, #tpu.memory_space<vmem>>, vector<1x1x128xf32>
    %15 = vector.shape_cast %14 : vector<1x1x128xf32> to vector<1x128xf32>
    %16 = arith.addf %13, %15 : vector<1x128xf32>
    %cst_14 = arith.constant 0.000000e+00 : f32
    %17 = vector.broadcast %cst_14 : f32 to vector<1x128xf32>
    %18 = arith.maximumf %16, %17 : vector<1x128xf32>
    %19 = arith.truncf %18 : vector<1x128xf32> to vector<1x128xbf16>
    %c2 = arith.constant 2 : index
    %c0_15 = arith.constant 0 : index
    %c0_16 = arith.constant 0 : index
    %20 = vector.load %arg1[%c2, %c0_15, %c0_16] : memref<6x128x128xbf16, #tpu.memory_space<vmem>>, vector<1x128x128xbf16>
    %21 = vector.shape_cast %20 : vector<1x128x128xbf16> to vector<128x128xbf16>
    %cst_17 = arith.constant dense<0.000000e+00> : vector<1x128xf32>
    %22 = tpu.matmul %19, %21, %cst_17 {dimension_numbers = #tpu.dot_dimension_numbers<[1], [0], [0], [1], [0, 0, 1, 1], [], []>} : vector<1x128xbf16>, vector<128x128xbf16>, vector<1x128xf32> -> vector<1x128xf32>
    %c2_18 = arith.constant 2 : index
    %c0_19 = arith.constant 0 : index
    %c0_20 = arith.constant 0 : index
    %23 = vector.load %arg2[%c2_18, %c0_19, %c0_20] : memref<6x1x128xf32, #tpu.memory_space<vmem>>, vector<1x1x128xf32>
    %24 = vector.shape_cast %23 : vector<1x1x128xf32> to vector<1x128xf32>
    %25 = arith.addf %22, %24 : vector<1x128xf32>
    %cst_21 = arith.constant 0.000000e+00 : f32
    %26 = vector.broadcast %cst_21 : f32 to vector<1x128xf32>
    %27 = arith.maximumf %25, %26 : vector<1x128xf32>
    %28 = arith.truncf %27 : vector<1x128xf32> to vector<1x128xbf16>
    %c3 = arith.constant 3 : index
    %c0_22 = arith.constant 0 : index
    %c0_23 = arith.constant 0 : index
    %29 = vector.load %arg1[%c3, %c0_22, %c0_23] : memref<6x128x128xbf16, #tpu.memory_space<vmem>>, vector<1x128x128xbf16>
    %30 = vector.shape_cast %29 : vector<1x128x128xbf16> to vector<128x128xbf16>
    %cst_24 = arith.constant dense<0.000000e+00> : vector<1x128xf32>
    %31 = tpu.matmul %28, %30, %cst_24 {dimension_numbers = #tpu.dot_dimension_numbers<[1], [0], [0], [1], [0, 0, 1, 1], [], []>} : vector<1x128xbf16>, vector<128x128xbf16>, vector<1x128xf32> -> vector<1x128xf32>
    %c3_25 = arith.constant 3 : index
    %c0_26 = arith.constant 0 : index
    %c0_27 = arith.constant 0 : index
    %32 = vector.load %arg2[%c3_25, %c0_26, %c0_27] : memref<6x1x128xf32, #tpu.memory_space<vmem>>, vector<1x1x128xf32>
    %33 = vector.shape_cast %32 : vector<1x1x128xf32> to vector<1x128xf32>
    %34 = arith.addf %31, %33 : vector<1x128xf32>
    %cst_28 = arith.constant 0.000000e+00 : f32
    %35 = vector.broadcast %cst_28 : f32 to vector<1x128xf32>
    %36 = arith.maximumf %34, %35 : vector<1x128xf32>
    %37 = arith.truncf %36 : vector<1x128xf32> to vector<1x128xbf16>
    %c4 = arith.constant 4 : index
    %c0_29 = arith.constant 0 : index
    %c0_30 = arith.constant 0 : index
    %38 = vector.load %arg1[%c4, %c0_29, %c0_30] : memref<6x128x128xbf16, #tpu.memory_space<vmem>>, vector<1x128x128xbf16>
    %39 = vector.shape_cast %38 : vector<1x128x128xbf16> to vector<128x128xbf16>
    %cst_31 = arith.constant dense<0.000000e+00> : vector<1x128xf32>
    %40 = tpu.matmul %37, %39, %cst_31 {dimension_numbers = #tpu.dot_dimension_numbers<[1], [0], [0], [1], [0, 0, 1, 1], [], []>} : vector<1x128xbf16>, vector<128x128xbf16>, vector<1x128xf32> -> vector<1x128xf32>
    %c4_32 = arith.constant 4 : index
    %c0_33 = arith.constant 0 : index
    %c0_34 = arith.constant 0 : index
    %41 = vector.load %arg2[%c4_32, %c0_33, %c0_34] : memref<6x1x128xf32, #tpu.memory_space<vmem>>, vector<1x1x128xf32>
    %42 = vector.shape_cast %41 : vector<1x1x128xf32> to vector<1x128xf32>
    %43 = arith.addf %40, %42 : vector<1x128xf32>
    %cst_35 = arith.constant 0.000000e+00 : f32
    %44 = vector.broadcast %cst_35 : f32 to vector<1x128xf32>
    %45 = arith.maximumf %43, %44 : vector<1x128xf32>
    %46 = arith.truncf %45 : vector<1x128xf32> to vector<1x128xbf16>
    %c5 = arith.constant 5 : index
    %c0_36 = arith.constant 0 : index
    %c0_37 = arith.constant 0 : index
    %47 = vector.load %arg1[%c5, %c0_36, %c0_37] : memref<6x128x128xbf16, #tpu.memory_space<vmem>>, vector<1x128x128xbf16>
    %48 = vector.shape_cast %47 : vector<1x128x128xbf16> to vector<128x128xbf16>
    %cst_38 = arith.constant dense<0.000000e+00> : vector<1x128xf32>
    %49 = tpu.matmul %46, %48, %cst_38 {dimension_numbers = #tpu.dot_dimension_numbers<[1], [0], [0], [1], [0, 0, 1, 1], [], []>} : vector<1x128xbf16>, vector<128x128xbf16>, vector<1x128xf32> -> vector<1x128xf32>
    %c5_39 = arith.constant 5 : index
    %c0_40 = arith.constant 0 : index
    %c0_41 = arith.constant 0 : index
    %50 = vector.load %arg2[%c5_39, %c0_40, %c0_41] : memref<6x1x128xf32, #tpu.memory_space<vmem>>, vector<1x1x128xf32>
    %51 = vector.shape_cast %50 : vector<1x1x128xf32> to vector<1x128xf32>
    %52 = arith.addf %49, %51 : vector<1x128xf32>
    %c0_42 = arith.constant 0 : index
    %c0_43 = arith.constant 0 : index
    %53 = vector.load %arg3[%c0_42, %c0_43] : memref<1x128xf32, #tpu.memory_space<vmem>>, vector<1x128xf32>
    tpu.vector_store %arg3[%c0_42, %c0_43], %52 {strides = array<i32>} : memref<1x128xf32, #tpu.memory_space<vmem>>, vector<1x128xf32>,
    return
  }
}

</mosaic_0001>

<llo_original>
// kernel: cnn_forward.1
$region0: #{cnn_forward.1}
  #allocation0 [shape = 'u32[]', space=smem, size = 0x4, offset = 0x4, fixed_abs, tag = 'smem constant byte address 0x4 - core index']
  #allocation1 [shape = 'u32[72,128]{1,0:T(1,128)}', space=vmem, size = 0x9000, scoped, tag = 'internal scratch']
  %s0 = inlined_call_operand.vmem [shape: f32[1,128], index: 0, kind: input, shape index: {}]
  %s1 = inlined_call_operand.hbm [shape: bf16[6,128,128], index: 1, kind: input, shape index: {}]
  %s2 = inlined_call_operand.vmem [shape: f32[6,1,128], index: 2, kind: input, shape index: {}]
  %s3 = inlined_call_operand.hbm [shape: f32[1,128], index: 3, kind: output, shape index: {}]
  %s4 = sld [smem:[#allocation0]]
  $region26: #{cnn_forward.1} parent=0
    _
  %s6 = ssub.s32 1, %s4
  %s7 = scalar_select 0, %s6, %s4
  $region1: #{cnn_forward.1} parent=0
    #allocation2 [shape = 'u8[196608]{0}', space=vmem, size = 0x30000, scoped, tag = 'input window, operand 1, single buffered']
    #allocation3 [shape = 's32[1]{0}', space=sflag, size = 0x4, scoped, tag = 'scoped memory for cnn_forward.1']
    #allocation4 [shape = 's32[1]{0}', space=sflag, size = 0x4, scoped, tag = 'scoped memory for cnn_forward.1']
    #allocation5 [shape = 'u8[512]{0}', space=vmem, size = 0x400, scoped, tag = 'output window, operand 0, single buffered']
    %8 = vsyncpa [#allocation3], 0
    %9 = vsyncpa [#allocation4], 0
    // Predicated region
    $region2: #{cnn_forward.1} parent=1 // pred_check
      _
    $region3: #{cnn_forward.1} parent=1 // pred_check_branch
      %11 = sbr.rel (0) target = $region5
    $region4: #{cnn_forward.1} parent=1 // pred_region
      _
    $region5: #{cnn_forward.1} parent=1 // pred_fallthru
      _
    // Predicated region
    $region6: #{cnn_forward.1} parent=1 // pred_check
      _
    $region7: #{cnn_forward.1} parent=1 // pred_check_branch
      %13 = sbr.rel (0) target = $region9
    $region8: #{cnn_forward.1} parent=1 // pred_region
      %15 = vsyncadd [#allocation3], 0
      %s16 = sshll.u32 %s1, 4
      %s17 = int_to_ptr.hbm [resolvable:$true] %s16
      %s18 = sshll.u32 [#allocation2], 4
      %s19 = int_to_ptr.vmem [resolvable:$true] %s18
      %24 = dma.hbm_to_vmem [thread:$0]  %s17, 6144, %s19, [#allocation3], 64, 64, 4
    $region9: #{cnn_forward.1} parent=1 // pred_fallthru
      _
    // Predicated region
    $region10: #{cnn_forward.1} parent=1 // pred_check
      _
    $region11: #{cnn_forward.1} parent=1 // pred_check_branch
      %26 = sbr.rel (0) target = $region13
    $region12: #{cnn_forward.1} parent=1 // pred_region
      _
    $region13: #{cnn_forward.1} parent=1 // pred_fallthru
      _
    // Predicated region
    $region14: #{cnn_forward.1} parent=1 // pred_check
      _
    $region15: #{cnn_forward.1} parent=1 // pred_check_branch
      %28 = sbr.rel (0) target = $region17
    $region16: #{cnn_forward.1} parent=1 // pred_region
      %30 = dma.done [#allocation3], 6144
    $region17: #{cnn_forward.1} parent=1 // pred_fallthru
      _
    %v31 = vld [vmem:[%s0] sm:$0x1]
    %v32 = vpack.c.bf16 %v31, %v31
    %v33 = vld [vmem:[#allocation2] sm:$0xf]
    %v34 = vld [vmem:[#allocation2 + $0x4] sm:$0xf]
    %v35 = vld [vmem:[#allocation2 + $0x8] sm:$0xf]
    %v36 = vld [vmem:[#allocation2 + $0xc] sm:$0xf]
    %v37 = vld [vmem:[#allocation2 + $0x10] sm:$0xf]
    %v38 = vld [vmem:[#allocation2 + $0x14] sm:$0xf]
    %v39 = vld [vmem:[#allocation2 + $0x18] sm:$0xf]
    %v40 = vld [vmem:[#allocation2 + $0x1c] sm:$0xf]
    %v41 = vld [vmem:[#allocation2 + $0x20] sm:$0xf]
    %v42 = vld [vmem:[#allocation2 + $0x24] sm:$0xf]
    %v43 = vld [vmem:[#allocation2 + $0x28] sm:$0xf]
    %v44 = vld [vmem:[#allocation2 + $0x2c] sm:$0xf]
    %v45 = vld [vmem:[#allocation2 + $0x30] sm:$0xf]
    %v46 = vld [vmem:[#allocation2 + $0x34] sm:$0xf]
    %v47 = vld [vmem:[#allocation2 + $0x38] sm:$0xf]
    %v48 = vld [vmem:[#allocation2 + $0x3c] sm:$0xf]
    %v49 = vld [vmem:[%s2] sm:$0x1]
    %v66 = vunpack.c.l.b16 %v33
    %v67 = vunpack.c.l.b16 %v34
    %v68 = vunpack.c.l.b16 %v35
    %v69 = vunpack.c.l.b16 %v36
    %v70 = vunpack.c.l.b16 %v37
    %v71 = vunpack.c.l.b16 %v38
    %v72 = vunpack.c.l.b16 %v39
    %v73 = vunpack.c.l.b16 %v40
    %v74 = vunpack.c.l.b16 %v41
    %v75 = vunpack.c.l.b16 %v42
    %v76 = vunpack.c.l.b16 %v43
    %v77 = vunpack.c.l.b16 %v44
    %v78 = vunpack.c.l.b16 %v45
    %v79 = vunpack.c.l.b16 %v46
    %v80 = vunpack.c.l.b16 %v47
    %v81 = vunpack.c.l.b16 %v48
    %v82 = vpack.c.b16 %v67, %v66
    %v83 = vpack.c.b16 %v69, %v68
    %v84 = vpack.c.b16 %v71, %v70
    %v85 = vpack.c.b16 %v73, %v72
    %v86 = vpack.c.b16 %v75, %v74
    %v87 = vpack.c.b16 %v77, %v76
    %v88 = vpack.c.b16 %v79, %v78
    %v89 = vpack.c.b16 %v81, %v80
    %98 = vmatpush.bf16.msra.mxu0 %v89
    %99 = vmatpush.bf16.msra.mxu0 %v88
    %100 = vmatpush.bf16.msra.mxu0 %v87
    %101 = vmatpush.bf16.msra.mxu0 %v86
    %102 = vmatpush.bf16.msra.mxu0 %v85
    %103 = vmatpush.bf16.msra.mxu0 %v84
    %104 = vmatpush.bf16.msra.mxu0 %v83
    %105 = vmatpush.bf16.msra.mxu0 %v82
    %106 = vmatmul.bf16.gmra.mxu0 %v32
    %v107 = vpop.f32.mrf.mxu0
    %v108 = vadd.f32 %v49, %v107
    %v109 = vpop.f32.mrf.mxu0
    %110 = vdwg.mxu0
    %v111 = vmax.f32 %v108, 0.0
    %v112 = vpack.c.bf16 %v111, %v111
    %s113 = scalar_lea.vmem [#allocation2], 64
    %v114 = vld [vmem:[%s113] sm:$0xf]
    %v115 = vld [vmem:[%s113 + $0x4] sm:$0xf]
    %v116 = vld [vmem:[%s113 + $0x8] sm:$0xf]
    %v117 = vld [vmem:[%s113 + $0xc] sm:$0xf]
    %v118 = vld [vmem:[%s113 + $0x10] sm:$0xf]
    %v119 = vld [vmem:[%s113 + $0x14] sm:$0xf]
    %v120 = vld [vmem:[%s113 + $0x18] sm:$0xf]
    %v121 = vld [vmem:[%s113 + $0x1c] sm:$0xf]
    %v122 = vld [vmem:[%s113 + $0x20] sm:$0xf]
    %v123 = vld [vmem:[%s113 + $0x24] sm:$0xf]
    %v124 = vld [vmem:[%s113 + $0x28] sm:$0xf]
    %v125 = vld [vmem:[%s113 + $0x2c] sm:$0xf]
    %v126 = vld [vmem:[%s113 + $0x30] sm:$0xf]
    %v127 = vld [vmem:[%s113 + $0x34] sm:$0xf]
    %v128 = vld [vmem:[%s113 + $0x38] sm:$0xf]
    %v129 = vld [vmem:[%s113 + $0x3c] sm:$0xf]
    %s130 = scalar_lea.vmem %s2, 1
    %v131 = vld [vmem:[%s130] sm:$0x1]
    %v148 = vunpack.c.l.b16 %v114
    %v149 = vunpack.c.l.b16 %v115
    %v150 = vunpack.c.l.b16 %v116
    %v151 = vunpack.c.l.b16 %v117
    %v152 = vunpack.c.l.b16 %v118
    %v153 = vunpack.c.l.b16 %v119
    %v154 = vunpack.c.l.b16 %v120
    %v155 = vunpack.c.l.b16 %v121
    %v156 = vunpack.c.l.b16 %v122
    %v157 = vunpack.c.l.b16 %v123
    %v158 = vunpack.c.l.b16 %v124
    %v159 = vunpack.c.l.b16 %v125
    %v160 = vunpack.c.l.b16 %v126
    %v161 = vunpack.c.l.b16 %v127
    %v162 = vunpack.c.l.b16 %v128
    %v163 = vunpack.c.l.b16 %v129
    %v164 = vpack.c.b16 %v149, %v148
    %v165 = vpack.c.b16 %v151, %v150
    %v166 = vpack.c.b16 %v153, %v152
    %v167 = vpack.c.b16 %v155, %v154
    %v168 = vpack.c.b16 %v157, %v156
    %v169 = vpack.c.b16 %v159, %v158
    %v170 = vpack.c.b16 %v161, %v160
    %v171 = vpack.c.b16 %v163, %v162
    %180 = vmatpush.bf16.msra.mxu0 %v171
    %181 = vmatpush.bf16.msra.mxu0 %v170
    %182 = vmatpush.bf16.msra.mxu0 %v169
    %183 = vmatpush.bf16.msra.mxu0 %v168
    %184 = vmatpush.bf16.msra.mxu0 %v167
    %185 = vmatpush.bf16.msra.mxu0 %v166
    %186 = vmatpush.bf16.msra.mxu0 %v165
    %187 = vmatpush.bf16.msra.mxu0 %v164
    %188 = vmatmul.bf16.gmra.mxu0 %v112
    %v189 = vpop.f32.mrf.mxu0
    %v190 = vadd.f32 %v131, %v189
    %v191 = vpop.f32.mrf.mxu0
    %192 = vdwg.mxu0
    %v193 = vmax.f32 %v190, 0.0
    %v194 = vpack.c.bf16 %v193, %v193
    %s195 = scalar_lea.vmem [#allocation2], 128
    %v196 = vld [vmem:[%s195] sm:$0xf]
    %v197 = vld [vmem:[%s195 + $0x4] sm:$0xf]
    %v198 = vld [vmem:[%s195 + $0x8] sm:$0xf]
    %v199 = vld [vmem:[%s195 + $0xc] sm:$0xf]
    %v200 = vld [vmem:[%s195 + $0x10] sm:$0xf]
    %v201 = vld [vmem:[%s195 + $0x14] sm:$0xf]
    %v202 = vld [vmem:[%s195 + $0x18] sm:$0xf]
    %v203 = vld [vmem:[%s195 + $0x1c] sm:$0xf]
    %v204 = vld [vmem:[%s195 + $0x20] sm:$0xf]
    %v205 = vld [vmem:[%s195 + $0x24] sm:$0xf]
    %v206 = vld [vmem:[%s195 + $0x28] sm:$0xf]
    %v207 = vld [vmem:[%s195 + $0x2c] sm:$0xf]
    %v208 = vld [vmem:[%s195 + $0x30] sm:$0xf]
    %v209 = vld [vmem:[%s195 + $0x34] sm:$0xf]
    %v210 = vld [vmem:[%s195 + $0x38] sm:$0xf]
    %v211 = vld [vmem:[%s195 + $0x3c] sm:$0xf]
    %s212 = scalar_lea.vmem %s2, 2
    %v213 = vld [vmem:[%s212] sm:$0x1]
    %v230 = vunpack.c.l.b16 %v196
    %v231 = vunpack.c.l.b16 %v197
    %v232 = vunpack.c.l.b16 %v198
    %v233 = vunpack.c.l.b16 %v199
    %v234 = vunpack.c.l.b16 %v200
    %v235 = vunpack.c.l.b16 %v201
    %v236 = vunpack.c.l.b16 %v202
    %v237 = vunpack.c.l.b16 %v203
    %v238 = vunpack.c.l.b16 %v204
    %v239 = vunpack.c.l.b16 %v205
    %v240 = vunpack.c.l.b16 %v206
    %v241 = vunpack.c.l.b16 %v207
    %v242 = vunpack.c.l.b16 %v208
    %v243 = vunpack.c.l.b16 %v209
    %v244 = vunpack.c.l.b16 %v210
    %v245 = vunpack.c.l.b16 %v211
    %v246 = vpack.c.b16 %v231, %v230
    %v247 = vpack.c.b16 %v233, %v232
    %v248 = vpack.c.b16 %v235, %v234
    %v249 = vpack.c.b16 %v237, %v236
    %v250 = vpack.c.b16 %v239, %v238
    %v251 = vpack.c.b16 %v241, %v240
    %v252 = vpack.c.b16 %v243, %v242
    %v253 = vpack.c.b16 %v245, %v244
    %262 = vmatpush.bf16.msra.mxu0 %v253
    %263 = vmatpush.bf16.msra.mxu0 %v252
    %264 = vmatpush.bf16.msra.mxu0 %v251
    %265 = vmatpush.bf16.msra.mxu0 %v250
    %266 = vmatpush.bf16.msra.mxu0 %v249
    %267 = vmatpush.bf16.msra.mxu0 %v248
    %268 = vmatpush.bf16.msra.mxu0 %v247
    %269 = vmatpush.bf16.msra.mxu0 %v246
    %270 = vmatmul.bf16.gmra.mxu0 %v194
    %v271 = vpop.f32.mrf.mxu0
    %v272 = vadd.f32 %v213, %v271
    %v273 = vpop.f32.mrf.mxu0
    %274 = vdwg.mxu0
    %v275 = vmax.f32 %v272, 0.0
    %v276 = vpack.c.bf16 %v275, %v275
    %s277 = scalar_lea.vmem [#allocation2], 192
    %v278 = vld [vmem:[%s277] sm:$0xf]
    %v279 = vld [vmem:[%s277 + $0x4] sm:$0xf]
    %v280 = vld [vmem:[%s277 + $0x8] sm:$0xf]
    %v281 = vld [vmem:[%s277 + $0xc] sm:$0xf]
    %v282 = vld [vmem:[%s277 + $0x10] sm:$0xf]
    %v283 = vld [vmem:[%s277 + $0x14] sm:$0xf]
    %v284 = vld [vmem:[%s277 + $0x18] sm:$0xf]
    %v285 = vld [vmem:[%s277 + $0x1c] sm:$0xf]
    %v286 = vld [vmem:[%s277 + $0x20] sm:$0xf]
    %v287 = vld [vmem:[%s277 + $0x24] sm:$0xf]
    %v288 = vld [vmem:[%s277 + $0x28] sm:$0xf]
    %v289 = vld [vmem:[%s277 + $0x2c] sm:$0xf]
    %v290 = vld [vmem:[%s277 + $0x30] sm:$0xf]
    %v291 = vld [vmem:[%s277 + $0x34] sm:$0xf]
    %v292 = vld [vmem:[%s277 + $0x38] sm:$0xf]
    %v293 = vld [vmem:[%s277 + $0x3c] sm:$0xf]
    %s294 = scalar_lea.vmem %s2, 3
    %v295 = vld [vmem:[%s294] sm:$0x1]
    %v312 = vunpack.c.l.b16 %v278
    %v313 = vunpack.c.l.b16 %v279
    %v314 = vunpack.c.l.b16 %v280
    %v315 = vunpack.c.l.b16 %v281
    %v316 = vunpack.c.l.b16 %v282
    %v317 = vunpack.c.l.b16 %v283
    %v318 = vunpack.c.l.b16 %v284
    %v319 = vunpack.c.l.b16 %v285
    %v320 = vunpack.c.l.b16 %v286
    %v321 = vunpack.c.l.b16 %v287
    %v322 = vunpack.c.l.b16 %v288
    %v323 = vunpack.c.l.b16 %v289
    %v324 = vunpack.c.l.b16 %v290
    %v325 = vunpack.c.l.b16 %v291
    %v326 = vunpack.c.l.b16 %v292
    %v327 = vunpack.c.l.b16 %v293
    %v328 = vpack.c.b16 %v313, %v312
    %v329 = vpack.c.b16 %v315, %v314
    %v330 = vpack.c.b16 %v317, %v316
    %v331 = vpack.c.b16 %v319, %v318
    %v332 = vpack.c.b16 %v321, %v320
    %v333 = vpack.c.b16 %v323, %v322
    %v334 = vpack.c.b16 %v325, %v324
    %v335 = vpack.c.b16 %v327, %v326
    %344 = vmatpush.bf16.msra.mxu0 %v335
    %345 = vmatpush.bf16.msra.mxu0 %v334
    %346 = vmatpush.bf16.msra.mxu0 %v333
    %347 = vmatpush.bf16.msra.mxu0 %v332
    %348 = vmatpush.bf16.msra.mxu0 %v331
    %349 = vmatpush.bf16.msra.mxu0 %v330
    %350 = vmatpush.bf16.msra.mxu0 %v329
    %351 = vmatpush.bf16.msra.mxu0 %v328
    %352 = vmatmul.bf16.gmra.mxu0 %v276
    %v353 = vpop.f32.mrf.mxu0
    %v354 = vadd.f32 %v295, %v353
    %v355 = vpop.f32.mrf.mxu0
    %356 = vdwg.mxu0
    %v357 = vmax.f32 %v354, 0.0
    %v358 = vpack.c.bf16 %v357, %v357
    %s359 = scalar_lea.vmem [#allocation2], 256
    %v360 = vld [vmem:[%s359] sm:$0xf]
    %v361 = vld [vmem:[%s359 + $0x4] sm:$0xf]
    %v362 = vld [vmem:[%s359 + $0x8] sm:$0xf]
    %v363 = vld [vmem:[%s359 + $0xc] sm:$0xf]
    %v364 = vld [vmem:[%s359 + $0x10] sm:$0xf]
    %v365 = vld [vmem:[%s359 + $0x14] sm:$0xf]
    %v366 = vld [vmem:[%s359 + $0x18] sm:$0xf]
    %v367 = vld [vmem:[%s359 + $0x1c] sm:$0xf]
    %v368 = vld [vmem:[%s359 + $0x20] sm:$0xf]
    %v369 = vld [vmem:[%s359 + $0x24] sm:$0xf]
    %v370 = vld [vmem:[%s359 + $0x28] sm:$0xf]
    %v371 = vld [vmem:[%s359 + $0x2c] sm:$0xf]
    %v372 = vld [vmem:[%s359 + $0x30] sm:$0xf]
    %v373 = vld [vmem:[%s359 + $0x34] sm:$0xf]
    %v374 = vld [vmem:[%s359 + $0x38] sm:$0xf]
    %v375 = vld [vmem:[%s359 + $0x3c] sm:$0xf]
    %s376 = scalar_lea.vmem %s2, 4
    %v377 = vld [vmem:[%s376] sm:$0x1]
    %v394 = vunpack.c.l.b16 %v360
    %v395 = vunpack.c.l.b16 %v361
    %v396 = vunpack.c.l.b16 %v362
    %v397 = vunpack.c.l.b16 %v363
    %v398 = vunpack.c.l.b16 %v364
    %v399 = vunpack.c.l.b16 %v365
    %v400 = vunpack.c.l.b16 %v366
    %v401 = vunpack.c.l.b16 %v367
    %v402 = vunpack.c.l.b16 %v368
    %v403 = vunpack.c.l.b16 %v369
    %v404 = vunpack.c.l.b16 %v370
    %v405 = vunpack.c.l.b16 %v371
    %v406 = vunpack.c.l.b16 %v372
    %v407 = vunpack.c.l.b16 %v373
    %v408 = vunpack.c.l.b16 %v374
    %v409 = vunpack.c.l.b16 %v375
    %v410 = vpack.c.b16 %v395, %v394
    %v411 = vpack.c.b16 %v397, %v396
    %v412 = vpack.c.b16 %v399, %v398
    %v413 = vpack.c.b16 %v401, %v400
    %v414 = vpack.c.b16 %v403, %v402
    %v415 = vpack.c.b16 %v405, %v404
    %v416 = vpack.c.b16 %v407, %v406
    %v417 = vpack.c.b16 %v409, %v408
    %426 = vmatpush.bf16.msra.mxu0 %v417
    %427 = vmatpush.bf16.msra.mxu0 %v416
    %428 = vmatpush.bf16.msra.mxu0 %v415
    %429 = vmatpush.bf16.msra.mxu0 %v414
    %430 = vmatpush.bf16.msra.mxu0 %v413
    %431 = vmatpush.bf16.msra.mxu0 %v412
    %432 = vmatpush.bf16.msra.mxu0 %v411
    %433 = vmatpush.bf16.msra.mxu0 %v410
    %434 = vmatmul.bf16.gmra.mxu0 %v358
    %v435 = vpop.f32.mrf.mxu0
    %v436 = vadd.f32 %v377, %v435
    %v437 = vpop.f32.mrf.mxu0
    %438 = vdwg.mxu0
    %v439 = vmax.f32 %v436, 0.0
    %v440 = vpack.c.bf16 %v439, %v439
    %s441 = scalar_lea.vmem [#allocation2], 320
    %v442 = vld [vmem:[%s441] sm:$0xf]
    %v443 = vld [vmem:[%s441 + $0x4] sm:$0xf]
    %v444 = vld [vmem:[%s441 + $0x8] sm:$0xf]
    %v445 = vld [vmem:[%s441 + $0xc] sm:$0xf]
    %v446 = vld [vmem:[%s441 + $0x10] sm:$0xf]
    %v447 = vld [vmem:[%s441 + $0x14] sm:$0xf]
    %v448 = vld [vmem:[%s441 + $0x18] sm:$0xf]
    %v449 = vld [vmem:[%s441 + $0x1c] sm:$0xf]
    %v450 = vld [vmem:[%s441 + $0x20] sm:$0xf]
    %v451 = vld [vmem:[%s441 + $0x24] sm:$0xf]
    %v452 = vld [vmem:[%s441 + $0x28] sm:$0xf]
    %v453 = vld [vmem:[%s441 + $0x2c] sm:$0xf]
    %v454 = vld [vmem:[%s441 + $0x30] sm:$0xf]
    %v455 = vld [vmem:[%s441 + $0x34] sm:$0xf]
    %v456 = vld [vmem:[%s441 + $0x38] sm:$0xf]
    %v457 = vld [vmem:[%s441 + $0x3c] sm:$0xf]
    %s458 = scalar_lea.vmem %s2, 5
    %v459 = vld [vmem:[%s458] sm:$0x1]
    %v476 = vunpack.c.l.b16 %v442
    %v477 = vunpack.c.l.b16 %v443
    %v478 = vunpack.c.l.b16 %v444
    %v479 = vunpack.c.l.b16 %v445
    %v480 = vunpack.c.l.b16 %v446
    %v481 = vunpack.c.l.b16 %v447
    %v482 = vunpack.c.l.b16 %v448
    %v483 = vunpack.c.l.b16 %v449
    %v484 = vunpack.c.l.b16 %v450
    %v485 = vunpack.c.l.b16 %v451
    %v486 = vunpack.c.l.b16 %v452
    %v487 = vunpack.c.l.b16 %v453
    %v488 = vunpack.c.l.b16 %v454
    %v489 = vunpack.c.l.b16 %v455
    %v490 = vunpack.c.l.b16 %v456
    %v491 = vunpack.c.l.b16 %v457
    %v492 = vpack.c.b16 %v477, %v476
    %v493 = vpack.c.b16 %v479, %v478
    %v494 = vpack.c.b16 %v481, %v480
    %v495 = vpack.c.b16 %v483, %v482
    %v496 = vpack.c.b16 %v485, %v484
    %v497 = vpack.c.b16 %v487, %v486
    %v498 = vpack.c.b16 %v489, %v488
    %v499 = vpack.c.b16 %v491, %v490
    %508 = vmatpush.bf16.msra.mxu0 %v499
    %509 = vmatpush.bf16.msra.mxu0 %v498
    %510 = vmatpush.bf16.msra.mxu0 %v497
    %511 = vmatpush.bf16.msra.mxu0 %v496
    %512 = vmatpush.bf16.msra.mxu0 %v495
    %513 = vmatpush.bf16.msra.mxu0 %v494
    %514 = vmatpush.bf16.msra.mxu0 %v493
    %515 = vmatpush.bf16.msra.mxu0 %v492
    %516 = vmatmul.bf16.gmra.mxu0 %v440
    %v517 = vpop.f32.mrf.mxu0
    %v518 = vadd.f32 %v459, %v517
    %v519 = vpop.f32.mrf.mxu0
    %520 = vdwg.mxu0
    %521 = vst [vmem:[#allocation5] sm:$0x1] %v518
    // Predicated region
    $region18: #{cnn_forward.1} parent=1 // pred_check
      _
    $region19: #{cnn_forward.1} parent=1 // pred_check_branch
      %523 = sbr.rel (0) target = $region21
    $region20: #{cnn_forward.1} parent=1 // pred_region
      %525 = vsyncadd [#allocation4], 0
      %s527 = sshll.u32 [#allocation5], 4
      %s528 = int_to_ptr.vmem [resolvable:$true] %s527
      %s529 = sshll.u32 %s3, 4
      %s530 = int_to_ptr.hbm [resolvable:$true] %s529
      %532 = dma.vmem_to_hbm [thread:$0]  %s528, 16, %s530, [#allocation4]
    $region21: #{cnn_forward.1} parent=1 // pred_fallthru
      _
    // Predicated region
    $region22: #{cnn_forward.1} parent=1 // pred_check
      _
    $region23: #{cnn_forward.1} parent=1 // pred_check_branch
      %534 = sbr.rel (0) target = $region25
    $region24: #{cnn_forward.1} parent=1 // pred_region
      %536 = dma.done [#allocation4], 16
    $region25: #{cnn_forward.1} parent=1 // pred_fallthru
      _
    %537 = vsyncpa [#allocation3], 1
    %538 = vsyncpa [#allocation4], 1

</llo_original>
